<compile_context>
chip_gen: v7x
topology: tpu7x:2x2x1
jax: 0.10.0
libtpu: 0.0.40
codegen_flags: <defaults>
</compile_context>

<pallas_src>
import functools

import jax
import jax.numpy as jnp
import numpy as np
from jax.experimental import pallas as pl
from jax.experimental.pallas import tpu as pltpu


# ----------------------------- kernels --------------------------------------


def _rsoftmax_kernel(x_ref, o_ref, *, radix, cardinality, rest):
    """Softmax over radix, written out in (radix, cardinality, rest) lane order.

    x_ref: (rows, cardinality*radix*rest) — lanes ordered (c, r, j); this is the
           free row-major view of the PyTorch input.
    o_ref: (rows, radix*cardinality*rest) — lanes ordered (r, c, j); this is the
           `.transpose(1, 2).reshape(batch, -1)` layout.  The transpose is done
           with static lane slices, no HBM data movement.
    """
    rr = radix * rest          # lanes per cardinality group on the input side
    cr = cardinality * rest    # lanes per radix slab on the output side

    for c in range(cardinality):
        # One cardinality group at a time keeps live f32 temporaries to a few
        # (rows, rest) slabs instead of whole-block slabs.
        chunk = x_ref[:, c * rr:(c + 1) * rr].astype(jnp.float32)

        xs = [chunk[:, r * rest:(r + 1) * rest] for r in range(radix)]
        m = xs[0]
        for r in range(1, radix):
            m = jnp.maximum(m, xs[r])

        es = [jnp.exp(v - m) for v in xs]
        s = es[0]
        for r in range(1, radix):
            s = s + es[r]

        # Exact reciprocal: approx=True (~1e-4 rel err) would break the 1e-6
        # tolerance contract.
        inv = pl.reciprocal(s, approx=False)

        for r in range(radix):
            start = r * cr + c * rest
            o_ref[:, start:start + rest] = (es[r] * inv).astype(o_ref.dtype)


def _sigmoid_kernel(x_ref, o_ref):
    x = x_ref[...].astype(jnp.float32)
    # Single-EUP sigmoid: 0.5 * (tanh(x/2) + 1).
    o_ref[...] = (0.5 * (jnp.tanh(0.5 * x) + 1.0)).astype(o_ref.dtype)


# ----------------------------- sizing helpers --------------------------------


def _round_up(n, m):
    return ((n + m - 1) // m) * m


def _padded_block_bytes(rows, cols, dtype):
    """Bytes a (rows, cols) block occupies in VMEM after (8,128) tiling."""
    itemsize = jnp.dtype(dtype).itemsize
    sublane = 8 * max(1, 4 // itemsize)   # packed dtypes tile more rows per sublane-tile
    return _round_up(max(rows, 1), sublane) * _round_up(max(cols, 1), 128) * itemsize


def _num_tensorcores(default=1):
    try:
        info = pltpu.get_tpu_info()
    except Exception:
        return default
    for name in ("num_cores", "tensorcore_count", "num_tensorcores", "core_count"):
        v = getattr(info, name, None)
        if isinstance(v, int) and v > 0:
            return v
    return default


def _vmem_capacity_bytes(default=64 << 20):
    try:
        info = pltpu.get_tpu_info()
    except Exception:
        return default
    v = getattr(info, "vmem_capacity_bytes", None)
    if isinstance(v, int) and v > 0:
        return v
    return default


def _choose_block_rows(batch, footprint, budget_bytes, num_cores, max_block_rows=None):
    """Pick rows-per-block.

    footprint(rows, n_buffers) -> padded VMEM bytes for one pipeline stage
    (input + output block times n_buffers, plus in-kernel temporaries).
    """
    want_steps = num_cores if (num_cores > 1 and batch >= 8 * num_cores) else 1
    forced = max_block_rows is not None and max_block_rows < batch

    # Whole array in one block (no grid, inherently single-buffered) if it fits
    # and we are not splitting for multiple TensorCores.
    if want_steps == 1 and not forced and footprint(batch, 1) <= budget_bytes:
        return batch

    tb = _round_up(pl.cdiv(batch, max(want_steps, 2)), 8)
    if forced:
        tb = min(tb, max(8, (max_block_rows // 8) * 8))
    while tb > 8 and footprint(tb, 2) > budget_bytes:
        tb -= 8
    tb = max(8, tb)
    if tb >= batch:
        return batch
    return tb


# ----------------------------- wrapper ---------------------------------------


def rsoftmax(x, radix, cardinality, *, max_block_rows=None):
    """Pallas implementation of rSoftMax.forward.

    x: (B, C, H, W) array (NCHW, matching the PyTorch module's input).
    Returns (B, C*H*W) if radix > 1, else sigmoid(x) with the original shape.
    `max_block_rows` is a test hook that caps rows-per-block to exercise the
    multi-step grid path.
    """
    batch = int(x.shape[0])
    feat = 1
    for d in x.shape[1:]:
        feat *= int(d)

    num_cores = _num_tensorcores()
    # Per-stage block budget: a slice of physical VMEM, clamped so that v5e's
    # 16 MiB scoped default and v7x's 32 MiB scoped default stay safe once
    # double buffering + temporaries are counted.
    budget = min(max(_vmem_capacity_bytes() // 8, 4 << 20), 12 << 20)

    if radix > 1:
        assert feat % (cardinality * radix) == 0, "C*H*W must divide by cardinality*radix"
        rest = feat // (cardinality * radix)

        def footprint(rows, n_buffers):
            blocks = n_buffers * 2 * _padded_block_bytes(rows, feat, x.dtype)  # in + out
            temps = _padded_block_bytes(rows, radix * rest, jnp.float32)
            temps += (2 * radix + 3) * _padded_block_bytes(rows, rest, jnp.float32)
            return blocks + temps

        tb = _choose_block_rows(batch, footprint, budget, num_cores, max_block_rows)
        steps = pl.cdiv(batch, tb)
        n_buffers = 1 if steps == 1 else 2
        vmem_limit = int(min(32 << 20, max(16 << 20, 2 * footprint(tb, n_buffers))))

        kernel = functools.partial(_rsoftmax_kernel, radix=radix,
                                   cardinality=cardinality, rest=rest)
        out_shape = jax.ShapeDtypeStruct((batch, feat), x.dtype)

        # Free row-major reshape == torch .view(batch, cardinality, radix, -1):
        # lanes of each row are (c, r, j) flattened; no data movement.
        x_in = x.reshape(batch, feat)

        if steps == 1:
            # Single whole-array block: no grid, no pipelining, single buffer.
            out = pl.pallas_call(
                kernel,
                out_shape=out_shape,
                compiler_params=pltpu.CompilerParams(vmem_limit_bytes=vmem_limit),
            )(x_in)
        else:
            # Multi-step grid of lane-dense (tb, feat) blocks.  Rows past
            # `batch` in the last block contain garbage on the input side
            # (exp of garbage is harmless) and are masked on the output side
            # by Pallas' out-of-bounds write handling — do not break this if
            # switching to manual DMA.
            out = pl.pallas_call(
                kernel,
                out_shape=out_shape,
                grid=(steps,),
                in_specs=[pl.BlockSpec((tb, feat), lambda b: (b, 0))],
                out_specs=pl.BlockSpec((tb, feat), lambda b: (b, 0)),
                compiler_params=pltpu.CompilerParams(
                    dimension_semantics=("parallel",),
                    vmem_limit_bytes=vmem_limit),
            )(x_in)

        # Lanes are already in (radix, cardinality, rest) order, matching
        # torch .transpose(1, 2).reshape(batch, -1).
        return out
    else:
        orig_shape = x.shape
        x_flat = x.reshape(batch, feat)

        def footprint(rows, n_buffers):
            blocks = n_buffers * 2 * _padded_block_bytes(rows, feat, x.dtype)
            temps = 2 * _padded_block_bytes(rows, feat, jnp.float32)
            return blocks + temps

        tb = _choose_block_rows(batch, footprint, budget, num_cores, max_block_rows)
        steps = pl.cdiv(batch, tb)
        n_buffers = 1 if steps == 1 else 2
        vmem_limit = int(min(32 << 20, max(16 << 20, 2 * footprint(tb, n_buffers))))

        if steps == 1:
            out = pl.pallas_call(
                _sigmoid_kernel,
                out_shape=jax.ShapeDtypeStruct((batch, feat), x.dtype),
                compiler_params=pltpu.CompilerParams(vmem_limit_bytes=vmem_limit),
            )(x_flat)
        else:
            out = pl.pallas_call(
                _sigmoid_kernel,
                out_shape=jax.ShapeDtypeStruct((batch, feat), x.dtype),
                grid=(steps,),
                in_specs=[pl.BlockSpec((tb, feat), lambda b: (b, 0))],
                out_specs=pl.BlockSpec((tb, feat), lambda b: (b, 0)),
                compiler_params=pltpu.CompilerParams(
                    dimension_semantics=("parallel",),
                    vmem_limit_bytes=vmem_limit),
            )(x_flat)
        return out.reshape(orig_shape)


# ----------------------------- reference -------------------------------------


def rsoftmax_ref(x, radix, cardinality):
    batch = x.shape[0]
    if radix > 1:
        x = x.reshape(batch, cardinality, radix, -1)
        x = jnp.transpose(x, (0, 2, 1, 3))
        x = jax.nn.softmax(x, axis=1)
        return x.reshape(batch, -1)
    else:
        return jax.nn.sigmoid(x)


# ----------------------------- main -------------------------------------------


if __name__ == "__main__":
    key = jax.random.PRNGKey(0)
    k1, k2, k3, k4, k5 = jax.random.split(key, 5)

    # Case 1: typical SplAtConv2d attention usage — fc2 output (B, channels*radix, 1, 1).
    x = jax.random.normal(k1, (2, 64, 1, 1), dtype=jnp.float32)   # rest = 8
    out = jax.block_until_ready(rsoftmax(x, 2, 4))
    np.testing.assert_allclose(np.asarray(out), np.asarray(rsoftmax_ref(x, 2, 4)),
                               atol=1e-6, rtol=1e-5)

    # Case 2: spatial extent > 1 (fully lane-dense feat = 256).
    x2 = jax.random.normal(k2, (4, 16, 4, 4), dtype=jnp.float32)  # rest = 64
    out2 = jax.block_until_ready(rsoftmax(x2, 2, 2))
    np.testing.assert_allclose(np.asarray(out2), np.asarray(rsoftmax_ref(x2, 2, 2)),
                               atol=1e-6, rtol=1e-5)

    # Case 3: common ResNeSt config radix=2, cardinality=1.
    x3 = jax.random.normal(k3, (2, 8, 2, 2), dtype=jnp.float32)   # rest = 16
    out3 = jax.block_until_ready(rsoftmax(x3, 2, 1))
    np.testing.assert_allclose(np.asarray(out3), np.asarray(rsoftmax_ref(x3, 2, 1)),
                               atol=1e-6, rtol=1e-5)

    # Case 4: radix == 1 path (sigmoid).
    x4 = jax.random.normal(k4, (2, 32, 1, 1), dtype=jnp.float32)
    out4 = jax.block_until_ready(rsoftmax(x4, 1, 4))
    np.testing.assert_allclose(np.asarray(out4), np.asarray(rsoftmax_ref(x4, 1, 4)),
                               atol=1e-6, rtol=1e-5)

    # Case 5: force the multi-step grid path; B=20 with 8-row blocks gives a
    # partial last block, exercising the out-of-bounds output masking the
    # kernel relies on for non-divisible batches.
    x5 = jax.random.normal(k5, (20, 16, 2, 2), dtype=jnp.float32)  # rest = 16
    out5 = jax.block_until_ready(rsoftmax(x5, 2, 2, max_block_rows=8))
    np.testing.assert_allclose(np.asarray(out5), np.asarray(rsoftmax_ref(x5, 2, 2)),
                               atol=1e-6, rtol=1e-5)

    print("KERNEL_OK")
</pallas_src>

<mosaic_0001>
module attributes {stable_mosaic.version = 11 : i64} {
  func.func @_rsoftmax_kernel(%arg0: memref<2x64xf32, #tpu.memory_space<vmem>>, %arg1: memref<2x64xf32, #tpu.memory_space<vmem>>) attributes {dimension_semantics = [], scalar_prefetch = 0 : i64, scratch_operands = 0 : i64, tpu.core_type = #tpu.core_type<tc>} {
    %c0 = arith.constant 0 : index
    %c0_0 = arith.constant 0 : index
    %0 = vector.load %arg0[%c0, %c0_0] : memref<2x64xf32, #tpu.memory_space<vmem>>, vector<2x16xf32>
    %1 = vector.extract_strided_slice %0 {offsets = [0, 0], sizes = [2, 8], strides = [1, 1]} : vector<2x16xf32> to vector<2x8xf32>
    %2 = vector.extract_strided_slice %0 {offsets = [0, 8], sizes = [2, 8], strides = [1, 1]} : vector<2x16xf32> to vector<2x8xf32>
    %3 = arith.maximumf %1, %2 : vector<2x8xf32>
    %4 = arith.subf %1, %3 : vector<2x8xf32>
    %5 = math.exp %4 : vector<2x8xf32>
    %6 = arith.subf %2, %3 : vector<2x8xf32>
    %7 = math.exp %6 : vector<2x8xf32>
    %8 = arith.addf %5, %7 : vector<2x8xf32>
    %9 = tpu.reciprocal %8 : vector<2x8xf32> -> vector<2x8xf32>
    %10 = arith.mulf %5, %9 : vector<2x8xf32>
    %c0_1 = arith.constant 0 : index
    %c0_2 = arith.constant 0 : index
    %11 = vector.load %arg1[%c0_1, %c0_2] : memref<2x64xf32, #tpu.memory_space<vmem>>, vector<2x8xf32>
    tpu.vector_store %arg1[%c0_1, %c0_2], %10 {strides = array<i32>} : memref<2x64xf32, #tpu.memory_space<vmem>>, vector<2x8xf32>,
    %12 = arith.mulf %7, %9 : vector<2x8xf32>
    %c0_3 = arith.constant 0 : index
    %c32 = arith.constant 32 : index
    %13 = vector.load %arg1[%c0_3, %c32] : memref<2x64xf32, #tpu.memory_space<vmem>>, vector<2x8xf32>
    tpu.vector_store %arg1[%c0_3, %c32], %12 {strides = array<i32>} : memref<2x64xf32, #tpu.memory_space<vmem>>, vector<2x8xf32>,
    %c0_4 = arith.constant 0 : index
    %c16 = arith.constant 16 : index
    %14 = vector.load %arg0[%c0_4, %c16] : memref<2x64xf32, #tpu.memory_space<vmem>>, vector<2x16xf32>
    %15 = vector.extract_strided_slice %14 {offsets = [0, 0], sizes = [2, 8], strides = [1, 1]} : vector<2x16xf32> to vector<2x8xf32>
    %16 = vector.extract_strided_slice %14 {offsets = [0, 8], sizes = [2, 8], strides = [1, 1]} : vector<2x16xf32> to vector<2x8xf32>
    %17 = arith.maximumf %15, %16 : vector<2x8xf32>
    %18 = arith.subf %15, %17 : vector<2x8xf32>
    %19 = math.exp %18 : vector<2x8xf32>
    %20 = arith.subf %16, %17 : vector<2x8xf32>
    %21 = math.exp %20 : vector<2x8xf32>
    %22 = arith.addf %19, %21 : vector<2x8xf32>
    %23 = tpu.reciprocal %22 : vector<2x8xf32> -> vector<2x8xf32>
    %24 = arith.mulf %19, %23 : vector<2x8xf32>
    %c0_5 = arith.constant 0 : index
    %c8 = arith.constant 8 : index
    %25 = vector.load %arg1[%c0_5, %c8] : memref<2x64xf32, #tpu.memory_space<vmem>>, vector<2x8xf32>
    tpu.vector_store %arg1[%c0_5, %c8], %24 {strides = array<i32>} : memref<2x64xf32, #tpu.memory_space<vmem>>, vector<2x8xf32>,
    %26 = arith.mulf %21, %23 : vector<2x8xf32>
    %c0_6 = arith.constant 0 : index
    %c40 = arith.constant 40 : index
    %27 = vector.load %arg1[%c0_6, %c40] : memref<2x64xf32, #tpu.memory_space<vmem>>, vector<2x8xf32>
    tpu.vector_store %arg1[%c0_6, %c40], %26 {strides = array<i32>} : memref<2x64xf32, #tpu.memory_space<vmem>>, vector<2x8xf32>,
    %c0_7 = arith.constant 0 : index
    %c32_8 = arith.constant 32 : index
    %28 = vector.load %arg0[%c0_7, %c32_8] : memref<2x64xf32, #tpu.memory_space<vmem>>, vector<2x16xf32>
    %29 = vector.extract_strided_slice %28 {offsets = [0, 0], sizes = [2, 8], strides = [1, 1]} : vector<2x16xf32> to vector<2x8xf32>
    %30 = vector.extract_strided_slice %28 {offsets = [0, 8], sizes = [2, 8], strides = [1, 1]} : vector<2x16xf32> to vector<2x8xf32>
    %31 = arith.maximumf %29, %30 : vector<2x8xf32>
    %32 = arith.subf %29, %31 : vector<2x8xf32>
    %33 = math.exp %32 : vector<2x8xf32>
    %34 = arith.subf %30, %31 : vector<2x8xf32>
    %35 = math.exp %34 : vector<2x8xf32>
    %36 = arith.addf %33, %35 : vector<2x8xf32>
    %37 = tpu.reciprocal %36 : vector<2x8xf32> -> vector<2x8xf32>
    %38 = arith.mulf %33, %37 : vector<2x8xf32>
    %c0_9 = arith.constant 0 : index
    %c16_10 = arith.constant 16 : index
    %39 = vector.load %arg1[%c0_9, %c16_10] : memref<2x64xf32, #tpu.memory_space<vmem>>, vector<2x8xf32>
    tpu.vector_store %arg1[%c0_9, %c16_10], %38 {strides = array<i32>} : memref<2x64xf32, #tpu.memory_space<vmem>>, vector<2x8xf32>,
    %40 = arith.mulf %35, %37 : vector<2x8xf32>
    %c0_11 = arith.constant 0 : index
    %c48 = arith.constant 48 : index
    %41 = vector.load %arg1[%c0_11, %c48] : memref<2x64xf32, #tpu.memory_space<vmem>>, vector<2x8xf32>
    tpu.vector_store %arg1[%c0_11, %c48], %40 {strides = array<i32>} : memref<2x64xf32, #tpu.memory_space<vmem>>, vector<2x8xf32>,
    %c0_12 = arith.constant 0 : index
    %c48_13 = arith.constant 48 : index
    %42 = vector.load %arg0[%c0_12, %c48_13] : memref<2x64xf32, #tpu.memory_space<vmem>>, vector<2x16xf32>
    %43 = vector.extract_strided_slice %42 {offsets = [0, 0], sizes = [2, 8], strides = [1, 1]} : vector<2x16xf32> to vector<2x8xf32>
    %44 = vector.extract_strided_slice %42 {offsets = [0, 8], sizes = [2, 8], strides = [1, 1]} : vector<2x16xf32> to vector<2x8xf32>
    %45 = arith.maximumf %43, %44 : vector<2x8xf32>
    %46 = arith.subf %43, %45 : vector<2x8xf32>
    %47 = math.exp %46 : vector<2x8xf32>
    %48 = arith.subf %44, %45 : vector<2x8xf32>
    %49 = math.exp %48 : vector<2x8xf32>
    %50 = arith.addf %47, %49 : vector<2x8xf32>
    %51 = tpu.reciprocal %50 : vector<2x8xf32> -> vector<2x8xf32>
    %52 = arith.mulf %47, %51 : vector<2x8xf32>
    %c0_14 = arith.constant 0 : index
    %c24 = arith.constant 24 : index
    %53 = vector.load %arg1[%c0_14, %c24] : memref<2x64xf32, #tpu.memory_space<vmem>>, vector<2x8xf32>
    tpu.vector_store %arg1[%c0_14, %c24], %52 {strides = array<i32>} : memref<2x64xf32, #tpu.memory_space<vmem>>, vector<2x8xf32>,
    %54 = arith.mulf %49, %51 : vector<2x8xf32>
    %c0_15 = arith.constant 0 : index
    %c56 = arith.constant 56 : index
    %55 = vector.load %arg1[%c0_15, %c56] : memref<2x64xf32, #tpu.memory_space<vmem>>, vector<2x8xf32>
    tpu.vector_store %arg1[%c0_15, %c56], %54 {strides = array<i32>} : memref<2x64xf32, #tpu.memory_space<vmem>>, vector<2x8xf32>,
    return
  }
}

</mosaic_0001>

<llo_original>
// kernel: tpu_custom_call.1
$region0: #{tpu_custom_call.1}
  #allocation0 [shape = 'u32[]', space=smem, size = 0x4, offset = 0x4, fixed_abs, tag = 'smem constant byte address 0x4 - core index']
  #allocation1 [shape = 'u32[144,128]{1,0:T(1,128)}', space=vmem, size = 0x12000, scoped, tag = 'internal scratch']
  %s0 = inlined_call_operand.hbm [shape: f32[2,64], index: 0, kind: input, shape index: {}]
  %s1 = inlined_call_operand.hbm [shape: f32[2,64], index: 1, kind: output, shape index: {}]
  %s2 = sld [smem:[#allocation0]]
  $region18: #{tpu_custom_call.1} parent=0
    _
  %s4 = ssub.s32 1, %s2
  %s5 = scalar_select 0, %s4, %s2
  $region1: #{tpu_custom_call.1} parent=0
    #allocation2 [shape = 'u8[1024]{0}', space=vmem, size = 0x400, scoped, tag = 'input window, operand 0, single buffered']
    #allocation3 [shape = 's32[1]{0}', space=sflag, size = 0x4, scoped, tag = 'scoped memory for tpu_custom_call.1']
    #allocation4 [shape = 's32[1]{0}', space=sflag, size = 0x4, scoped, tag = 'scoped memory for tpu_custom_call.1']
    #allocation5 [shape = 'u8[1024]{0}', space=vmem, size = 0x400, scoped, tag = 'output window, operand 0, single buffered']
    %6 = vsyncpa [#allocation3], 0
    %7 = vsyncpa [#allocation4], 0
    // Predicated region
    $region2: #{tpu_custom_call.1} parent=1 // pred_check
      _
    $region3: #{tpu_custom_call.1} parent=1 // pred_check_branch
      %9 = sbr.rel (0) target = $region5
    $region4: #{tpu_custom_call.1} parent=1 // pred_region
      %s11 = ssub.s32 32, 32
      %12 = vsyncadd [#allocation3], %s11
      %s14 = sshll.u32 [#allocation2], 4
      %s15 = int_to_ptr.vmem [resolvable:$true] %s14
      %17 = dma.hbm_to_vmem [thread:$0]  %s0, 32, %s15, [#allocation3]
    $region5: #{tpu_custom_call.1} parent=1 // pred_fallthru
      _
    // Predicated region
    $region6: #{tpu_custom_call.1} parent=1 // pred_check
      _
    $region7: #{tpu_custom_call.1} parent=1 // pred_check_branch
      %19 = sbr.rel (0) target = $region9
    $region8: #{tpu_custom_call.1} parent=1 // pred_region
      %20 = dma.done [#allocation3], 32
    $region9: #{tpu_custom_call.1} parent=1 // pred_fallthru
      _
    %v21 = vld [vmem:[#allocation2] sm:$0x3]
    %23 = vrot.lane.b32.xlu0 %v21, 120
    %v24 = vpop.permute.xlu0 %23
    %v26 = vmax.f32 %v21, %v24
    %v27 = vsub.f32 %v21, %v26
    %v28 = vmul.f32 %v27, 1.442695
    %v29 = vpow.pop %v28
    %31 = vrot.lane.b32.xlu0 %v26, 8
    %v32 = vpop.permute.xlu0 %31
    %v34 = vsub.f32 %v21, %v32
    %v35 = vmul.f32 %v34, 1.442695
    %v36 = vpow.pop %v35
    %38 = vrot.lane.b32.xlu0 %v36, 120
    %v39 = vpop.permute.xlu0 %38
    %v41 = vadd.f32 %v29, %v39
    %v42 = vrcp.pop %v41
    %v43 = vmul.f32 %v29, %v42
    %vm44 = vcmask 58368
    %45 = vst.msk [vmem:[#allocation5] sm:$0x3] %vm44, %v43
    %47 = vrot.lane.b32.xlu0 %v42, 8
    %v48 = vpop.permute.xlu0 %47
    %v50 = vmul.f32 %v36, %v48
    %52 = vrot.lane.b32.xlu0 %v50, 24
    %v53 = vpop.permute.xlu0 %52
    %vm55 = vcmask 320768
    %56 = vst.msk [vmem:[#allocation5] sm:$0x3] %vm55, %v53
    %v57 = vld [vmem:[#allocation2] sm:$0x3]
    %59 = vrot.lane.b32.xlu0 %v57, 120
    %v60 = vpop.permute.xlu0 %59
    %v62 = vmax.f32 %v57, %v60
    %v63 = vsub.f32 %v57, %v62
    %v64 = vmul.f32 %v63, 1.442695
    %v65 = vpow.pop %v64
    %67 = vrot.lane.b32.xlu0 %v62, 8
    %v68 = vpop.permute.xlu0 %67
    %v70 = vsub.f32 %v57, %v68
    %v71 = vmul.f32 %v70, 1.442695
    %v72 = vpow.pop %v71
    %74 = vrot.lane.b32.xlu0 %v72, 120
    %v75 = vpop.permute.xlu0 %74
    %v77 = vadd.f32 %v65, %v75
    %v78 = vrcp.pop %v77
    %v79 = vmul.f32 %v65, %v78
    %81 = vrot.lane.b32.xlu0 %v79, 120
    %v82 = vpop.permute.xlu0 %81
    %vm84 = vcmask 123968
    %85 = vst.msk [vmem:[#allocation5] sm:$0x3] %vm84, %v82
    %87 = vrot.lane.b32.xlu0 %v78, 8
    %v88 = vpop.permute.xlu0 %87
    %v90 = vmul.f32 %v72, %v88
    %92 = vrot.lane.b32.xlu0 %v90, 16
    %v93 = vpop.permute.xlu0 %92
    %vm95 = vcmask 386368
    %96 = vst.msk [vmem:[#allocation5] sm:$0x3] %vm95, %v93
    %v97 = vld [vmem:[#allocation2] sm:$0x3]
    %99 = vrot.lane.b32.xlu0 %v97, 120
    %v100 = vpop.permute.xlu0 %99
    %v102 = vmax.f32 %v97, %v100
    %v103 = vsub.f32 %v97, %v102
    %v104 = vmul.f32 %v103, 1.442695
    %v105 = vpow.pop %v104
    %107 = vrot.lane.b32.xlu0 %v102, 8
    %v108 = vpop.permute.xlu0 %107
    %v110 = vsub.f32 %v97, %v108
    %v111 = vmul.f32 %v110, 1.442695
    %v112 = vpow.pop %v111
    %114 = vrot.lane.b32.xlu0 %v112, 120
    %v115 = vpop.permute.xlu0 %114
    %v117 = vadd.f32 %v105, %v115
    %v118 = vrcp.pop %v117
    %v119 = vmul.f32 %v105, %v118
    %121 = vrot.lane.b32.xlu0 %v119, 112
    %v122 = vpop.permute.xlu0 %121
    %vm124 = vcmask 189568
    %125 = vst.msk [vmem:[#allocation5] sm:$0x3] %vm124, %v122
    %127 = vrot.lane.b32.xlu0 %v118, 8
    %v128 = vpop.permute.xlu0 %127
    %v130 = vmul.f32 %v112, %v128
    %132 = vrot.lane.b32.xlu0 %v130, 8
    %v133 = vpop.permute.xlu0 %132
    %vm135 = vcmask 451968
    %136 = vst.msk [vmem:[#allocation5] sm:$0x3] %vm135, %v133
    %v137 = vld [vmem:[#allocation2] sm:$0x3]
    %139 = vrot.lane.b32.xlu0 %v137, 120
    %v140 = vpop.permute.xlu0 %139
    %v142 = vmax.f32 %v137, %v140
    %v143 = vsub.f32 %v137, %v142
    %v144 = vmul.f32 %v143, 1.442695
    %v145 = vpow.pop %v144
    %147 = vrot.lane.b32.xlu0 %v142, 8
    %v148 = vpop.permute.xlu0 %147
    %v150 = vsub.f32 %v137, %v148
    %v151 = vmul.f32 %v150, 1.442695
    %v152 = vpow.pop %v151
    %154 = vrot.lane.b32.xlu0 %v152, 120
    %v155 = vpop.permute.xlu0 %154
    %v157 = vadd.f32 %v145, %v155
    %v158 = vrcp.pop %v157
    %v159 = vmul.f32 %v145, %v158
    %161 = vrot.lane.b32.xlu0 %v159, 104
    %v162 = vpop.permute.xlu0 %161
    %vm164 = vcmask 255168
    %165 = vst.msk [vmem:[#allocation5] sm:$0x3] %vm164, %v162
    %167 = vrot.lane.b32.xlu0 %v158, 8
    %v168 = vpop.permute.xlu0 %167
    %v170 = vmul.f32 %v152, %v168
    %vm171 = vcmask 517568
    %172 = vst.msk [vmem:[#allocation5] sm:$0x3] %vm171, %v170
    // Predicated region
    $region10: #{tpu_custom_call.1} parent=1 // pred_check
      _
    $region11: #{tpu_custom_call.1} parent=1 // pred_check_branch
      %174 = sbr.rel (0) target = $region13
    $region12: #{tpu_custom_call.1} parent=1 // pred_region
      %s176 = ssub.s32 32, 32
      %177 = vsyncadd [#allocation4], %s176
      %s179 = sshll.u32 [#allocation5], 4
      %s180 = int_to_ptr.vmem [resolvable:$true] %s179
      %182 = dma.vmem_to_hbm [thread:$0]  %s180, 32, %s1, [#allocation4]
    $region13: #{tpu_custom_call.1} parent=1 // pred_fallthru
      _
    // Predicated region
    $region14: #{tpu_custom_call.1} parent=1 // pred_check
      _
    $region15: #{tpu_custom_call.1} parent=1 // pred_check_branch
      %184 = sbr.rel (0) target = $region17
    $region16: #{tpu_custom_call.1} parent=1 // pred_region
      %185 = dma.done [#allocation4], 32
    $region17: #{tpu_custom_call.1} parent=1 // pred_fallthru
      _
    %186 = vsyncpa [#allocation3], 1
    %187 = vsyncpa [#allocation4], 1

</llo_original>
